<compile_context>
chip_gen: v6e
topology: v6e:2x2x1
jax: 0.10.0
libtpu: 0.0.40
codegen_flags: <defaults>
</compile_context>

<pallas_src>
import functools

import jax
import jax.numpy as jnp
from jax.experimental import pallas as pl
from jax.experimental.pallas import tpu as pltpu


def _round_up(x, m):
    return ((x + m - 1) // m) * m


# ----------------------------------------------------------------------------
# Tiled linear kernels
# ----------------------------------------------------------------------------

def _matmul_kernel(x_ref, w_ref, o_ref, acc_ref):
    @pl.when(pl.program_id(2) == 0)
    def _():
        acc_ref[...] = jnp.zeros_like(acc_ref)

    acc_ref[...] += jnp.dot(x_ref[...], w_ref[...],
                            preferred_element_type=jnp.float32)

    @pl.when(pl.program_id(2) == pl.num_programs(2) - 1)
    def _():
        o_ref[...] = acc_ref[...].astype(o_ref.dtype)


def _matmul_bias_kernel(x_ref, w_ref, b_ref, o_ref, acc_ref):
    @pl.when(pl.program_id(2) == 0)
    def _():
        acc_ref[...] = jnp.zeros_like(acc_ref)

    acc_ref[...] += jnp.dot(x_ref[...], w_ref[...],
                            preferred_element_type=jnp.float32)

    @pl.when(pl.program_id(2) == pl.num_programs(2) - 1)
    def _():
        o_ref[...] = (acc_ref[...] + b_ref[...].astype(jnp.float32)
                      ).astype(o_ref.dtype)


def pallas_linear(x, w, b=None, *, tm=256, tn=256, tk=256):
    """x: (M, K) @ w: (K, Nout) [+ b: (Nout,)] -> (M, Nout), tiled & pipelined."""
    M, K = x.shape
    Kw, Nout = w.shape
    assert K == Kw

    # Clamp tiles to the (alignment-padded) problem size so small configs
    # still produce valid (8, 128)-divisible blocks.
    tm = min(tm, _round_up(M, 8))
    tn = min(tn, _round_up(Nout, 128))
    tk = min(tk, _round_up(K, 128))
    Mp, Np, Kp = _round_up(M, tm), _round_up(Nout, tn), _round_up(K, tk)

    xp = jnp.pad(x, ((0, Mp - M), (0, Kp - K))) if (Mp, Kp) != (M, K) else x
    wp = jnp.pad(w, ((0, Kp - K), (0, Np - Nout))) if (Kp, Np) != (K, Nout) else w

    grid = (Mp // tm, Np // tn, Kp // tk)
    x_spec = pl.BlockSpec((tm, tk), lambda i, j, k: (i, k))
    w_spec = pl.BlockSpec((tk, tn), lambda i, j, k: (k, j))
    o_spec = pl.BlockSpec((tm, tn), lambda i, j, k: (i, j))

    cparams = pltpu.CompilerParams(
        dimension_semantics=("parallel", "parallel", "arbitrary"),
        # Keep headroom under v7x's 64 MiB physical VMEM while still allowing
        # larger-than-default-scoped tiles on v5e/v6e.
        vmem_limit_bytes=48 * 1024 * 1024,
    )
    scratch = [pltpu.VMEM((tm, tn), jnp.float32)]

    if b is None:
        out = pl.pallas_call(
            _matmul_kernel,
            out_shape=jax.ShapeDtypeStruct((Mp, Np), x.dtype),
            grid=grid,
            in_specs=[x_spec, w_spec],
            out_specs=o_spec,
            scratch_shapes=scratch,
            compiler_params=cparams,
        )(xp, wp)
    else:
        bp = b.reshape(1, Nout)
        if Np != Nout:
            bp = jnp.pad(bp, ((0, 0), (0, Np - Nout)))
        b_spec = pl.BlockSpec((1, tn), lambda i, j, k: (0, j))
        out = pl.pallas_call(
            _matmul_bias_kernel,
            out_shape=jax.ShapeDtypeStruct((Mp, Np), x.dtype),
            grid=grid,
            in_specs=[x_spec, w_spec, b_spec],
            out_specs=o_spec,
            scratch_shapes=scratch,
            compiler_params=cparams,
        )(xp, wp, bp)

    if (Mp, Np) != (M, Nout):
        out = out[:M, :Nout]
    return out


# ----------------------------------------------------------------------------
# Multi-head attention with polynomial RPE bias (one batch element per step)
# ----------------------------------------------------------------------------

def _mha_rpe_kernel(qkv_ref, rpe_ref, o_ref, *, num_heads, head_dim, scale):
    """qkv_ref: (1, Np, 3C); rpe_ref: (H, Np, Np); o_ref: (1, Np, C)."""
    C = num_heads * head_dim
    # TODO(synk): optionally feed bf16 operands to the MXU (f32 accumulation)
    # on v5e/v6e/v7x when tolerance allows; kept f32 here for exactness.
    for h in range(num_heads):
        q = qkv_ref[0, :, h * head_dim:(h + 1) * head_dim].astype(jnp.float32)
        k = qkv_ref[0, :, C + h * head_dim:C + (h + 1) * head_dim].astype(jnp.float32)
        v = qkv_ref[0, :, 2 * C + h * head_dim:2 * C + (h + 1) * head_dim].astype(jnp.float32)

        # q @ k^T without materializing a transpose: contract last dims.
        s = jax.lax.dot_general(
            q * scale, k,
            dimension_numbers=(((1,), (1,)), ((), ())),
            preferred_element_type=jnp.float32)
        s = s + rpe_ref[h].astype(jnp.float32)

        m = jnp.max(s, axis=-1, keepdims=True)
        p = jnp.exp(s - m)
        denom = jnp.sum(p, axis=-1, keepdims=True)
        p = p * pl.reciprocal(denom, approx=True)

        o = jnp.dot(p, v, preferred_element_type=jnp.float32)
        o_ref[0, :, h * head_dim:(h + 1) * head_dim] = o.astype(o_ref.dtype)


def pallas_mha_rpe(qkv, rpe, num_heads, scale):
    """qkv: (B, Np, 3C); rpe: (H, Np, Np) -> (B, Np, C)."""
    B, Npad, C3 = qkv.shape
    C = C3 // 3
    Dh = C // num_heads
    kernel = functools.partial(_mha_rpe_kernel, num_heads=num_heads,
                               head_dim=Dh, scale=scale)
    return pl.pallas_call(
        kernel,
        out_shape=jax.ShapeDtypeStruct((B, Npad, C), qkv.dtype),
        grid=(B,),
        in_specs=[
            pl.BlockSpec((1, Npad, C3), lambda b: (b, 0, 0)),
            # Constant index map -> RPE bias stays resident in VMEM across B.
            pl.BlockSpec((num_heads, Npad, Npad), lambda b: (0, 0, 0)),
        ],
        out_specs=pl.BlockSpec((1, Npad, C), lambda b: (b, 0, 0)),
        compiler_params=pltpu.CompilerParams(
            dimension_semantics=("parallel",)),
    )(qkv, rpe)


# ----------------------------------------------------------------------------
# Parameters + forward (glue in plain JAX, hot path in Pallas)
# ----------------------------------------------------------------------------

def init_params(key, dim, num_heads, poly_deg):
    k1, k2, k3, k4 = jax.random.split(key, 4)
    return {
        # qkv: nn.Linear(dim, 3*dim, bias=False) -> weight stored as (dim, 3*dim)
        "qkv_w": 0.02 * jax.random.normal(k1, (dim, 3 * dim), jnp.float32),
        # proj: nn.Linear(dim, dim) with bias
        "proj_w": 0.02 * jax.random.normal(k2, (dim, dim), jnp.float32),
        "proj_b": 0.02 * jax.random.normal(k3, (dim,), jnp.float32),
        # poly_coeffs: (num_heads, poly_deg + 1)
        "poly_coeffs": jax.random.normal(k4, (num_heads, poly_deg + 1),
                                         jnp.float32),
    }


def make_powers(grid_size, poly_deg):
    """powers[d, x, y] = L1-dist(coord_x, coord_y) ** d, shape (deg+1, HW, HW)."""
    Hg, Wg = grid_size
    ii, jj = jnp.meshgrid(jnp.arange(Hg), jnp.arange(Wg), indexing="ij")
    coords = jnp.stack([ii, jj], axis=-1).reshape(-1, 2).astype(jnp.float32)
    dists = jnp.sum(jnp.abs(coords[:, None, :] - coords[None, :, :]), axis=-1)
    return jnp.stack([dists ** i for i in range(poly_deg + 1)], axis=0)


def poly_rpe_attention_forward(x, params, powers, grid_size, num_heads):
    B, N, C = x.shape
    Hg, Wg = grid_size
    assert N == Hg * Wg + 1
    Dh = C // num_heads
    scale = Dh ** (-0.5)

    # qkv projection (tiled Pallas matmul, no bias path -> no zero-bias add).
    qkv = pallas_linear(x.reshape(B * N, C), params["qkv_w"])
    qkv = qkv.reshape(B, N, 3 * C)        # column layout: [q heads | k heads | v heads]

    # Polynomial relative position bias (small parameter glue, plain JAX).
    rpe = jnp.einsum("hd,dxy->hxy", params["poly_coeffs"], powers)  # (H, HW, HW)
    rpe = jnp.pad(rpe, ((0, 0), (1, 0), (1, 0)))                    # CLS row/col = 0

    # Pad token axis to a multiple of 8 sublanes; mask padded keys via -inf bias.
    Npad = _round_up(N, 8)
    pad = Npad - N
    if pad:
        qkv = jnp.pad(qkv, ((0, 0), (0, pad), (0, 0)))
        rpe = jnp.pad(rpe, ((0, 0), (0, pad), (0, pad)))
        key_is_pad = jnp.arange(Npad) >= N
        rpe = jnp.where(key_is_pad[None, None, :], -1e30, rpe)

    # Attention hot path in Pallas: writes lane-dense (Np, C) slabs directly.
    out = pallas_mha_rpe(qkv, rpe, num_heads, scale)                # (B, Npad, C)
    if pad:
        out = out[:, :N, :]

    # Output projection (tiled Pallas matmul with bias).
    out = pallas_linear(out.reshape(B * N, C), params["proj_w"],
                        params["proj_b"]).reshape(B, N, C)
    # attn_drop / proj_drop are 0.0 -> identity at inference.
    return out


# ----------------------------------------------------------------------------
# Pure-JAX reference (for correctness check)
# ----------------------------------------------------------------------------

def reference_forward(x, params, powers, grid_size, num_heads):
    B, N, C = x.shape
    Dh = C // num_heads
    scale = Dh ** (-0.5)
    qkv = x @ params["qkv_w"]
    qkv = qkv.reshape(B, N, 3, num_heads, Dh).transpose(2, 0, 3, 1, 4)
    q, k, v = qkv[0] * scale, qkv[1], qkv[2]
    rpe = jnp.einsum("hd,dxy->hxy", params["poly_coeffs"], powers)
    rpe = jnp.pad(rpe, ((0, 0), (1, 0), (1, 0)))
    attn = jnp.einsum("bhnd,bhmd->bhnm", q, k) + rpe[None]
    attn = jax.nn.softmax(attn, axis=-1)
    out = jnp.einsum("bhnm,bhmd->bhnd", attn, v)
    out = out.transpose(0, 2, 1, 3).reshape(B, N, C)
    return out @ params["proj_w"] + params["proj_b"]


# ----------------------------------------------------------------------------
# Main
# ----------------------------------------------------------------------------

if __name__ == "__main__":
    B = 2
    dim = 32
    num_heads = 4
    poly_deg = 3
    grid_size = (4, 4)
    N = grid_size[0] * grid_size[1] + 1   # 17 (CLS token + patches)

    key = jax.random.PRNGKey(0)
    kx, kp = jax.random.split(key)
    x = jax.random.normal(kx, (B, N, dim), jnp.float32)
    params = init_params(kp, dim, num_heads, poly_deg)
    powers = make_powers(grid_size, poly_deg)

    out = poly_rpe_attention_forward(x, params, powers, grid_size, num_heads)
    out = jax.block_until_ready(out)

    ref = jax.block_until_ready(
        reference_forward(x, params, powers, grid_size, num_heads))

    assert out.shape == (B, N, dim), out.shape
    # Slightly looser tolerance: softmax denom uses the EUP approx reciprocal.
    assert jnp.allclose(out, ref, rtol=1e-3, atol=1e-3), (
        float(jnp.max(jnp.abs(out - ref))))
    print("KERNEL_OK")
</pallas_src>

<mosaic_0001>
module attributes {stable_mosaic.version = 11 : i64} {
  func.func @_matmul_kernel(%arg0: i32, %arg1: i32, %arg2: i32, %arg3: memref<40x128xf32, #tpu.memory_space<vmem>>, %arg4: memref<128x128xf32, #tpu.memory_space<vmem>>, %arg5: memref<40x128xf32, #tpu.memory_space<vmem>>, %arg6: memref<40x128xf32, #tpu.memory_space<vmem>>) attributes {dimension_semantics = [#tpu.dimension_semantics<parallel>, #tpu.dimension_semantics<parallel>, #tpu.dimension_semantics<arbitrary>], iteration_bounds = array<i64: 1, 1, 1>, scalar_prefetch = 0 : i64, scratch_operands = 1 : i64, tpu.core_type = #tpu.core_type<tc>, window_params = [{transform_indices = @transform_0, window_bounds = array<i64: 40, 128>}, {transform_indices = @transform_1, window_bounds = array<i64: 128, 128>}, {transform_indices = @transform_2, window_bounds = array<i64: 40, 128>}]} {
    %c0_i32 = arith.constant 0 : i32
    %0 = arith.cmpi eq, %arg2, %c0_i32 : i32
    %1 = arith.extui %0 : i1 to i32
    %c0_i32_0 = arith.constant 0 : i32
    %2 = arith.cmpi ne, %1, %c0_i32_0 : i32
    scf.if %2 {
      %cst_10 = arith.constant 0.000000e+00 : f32
      %12 = vector.broadcast %cst_10 : f32 to vector<40x128xf32>
      %c0_11 = arith.constant 0 : index
      %c0_12 = arith.constant 0 : index
      %13 = vector.load %arg6[%c0_11, %c0_12] : memref<40x128xf32, #tpu.memory_space<vmem>>, vector<40x128xf32>
      tpu.vector_store %arg6[%c0_11, %c0_12], %12 {strides = array<i32>} : memref<40x128xf32, #tpu.memory_space<vmem>>, vector<40x128xf32>,
    } else {
    }
    %c0 = arith.constant 0 : index
    %c0_1 = arith.constant 0 : index
    %3 = vector.load %arg6[%c0, %c0_1] : memref<40x128xf32, #tpu.memory_space<vmem>>, vector<40x128xf32>
    %c0_2 = arith.constant 0 : index
    %c0_3 = arith.constant 0 : index
    %4 = vector.load %arg3[%c0_2, %c0_3] : memref<40x128xf32, #tpu.memory_space<vmem>>, vector<40x128xf32>
    %c0_4 = arith.constant 0 : index
    %c0_5 = arith.constant 0 : index
    %5 = vector.load %arg4[%c0_4, %c0_5] : memref<128x128xf32, #tpu.memory_space<vmem>>, vector<128x128xf32>
    %cst = arith.constant dense<0.000000e+00> : vector<40x128xf32>
    %6 = tpu.matmul %4, %5, %cst {dimension_numbers = #tpu.dot_dimension_numbers<[1], [0], [0], [1], [0, 0, 1, 1], [], []>} : vector<40x128xf32>, vector<128x128xf32>, vector<40x128xf32> -> vector<40x128xf32>
    %7 = arith.addf %3, %6 : vector<40x128xf32>
    %c0_6 = arith.constant 0 : index
    %c0_7 = arith.constant 0 : index
    %8 = vector.load %arg6[%c0_6, %c0_7] : memref<40x128xf32, #tpu.memory_space<vmem>>, vector<40x128xf32>
    tpu.vector_store %arg6[%c0_6, %c0_7], %7 {strides = array<i32>} : memref<40x128xf32, #tpu.memory_space<vmem>>, vector<40x128xf32>,
    %c0_i32_8 = arith.constant 0 : i32
    %9 = arith.cmpi eq, %arg2, %c0_i32_8 : i32
    %10 = arith.extui %9 : i1 to i32
    %c0_i32_9 = arith.constant 0 : i32
    %11 = arith.cmpi ne, %10, %c0_i32_9 : i32
    scf.if %11 {
      %c0_10 = arith.constant 0 : index
      %c0_11 = arith.constant 0 : index
      %12 = vector.load %arg6[%c0_10, %c0_11] : memref<40x128xf32, #tpu.memory_space<vmem>>, vector<40x128xf32>
      %c0_12 = arith.constant 0 : index
      %c0_13 = arith.constant 0 : index
      %13 = vector.load %arg5[%c0_12, %c0_13] : memref<40x128xf32, #tpu.memory_space<vmem>>, vector<40x128xf32>
      tpu.vector_store %arg5[%c0_12, %c0_13], %12 {strides = array<i32>} : memref<40x128xf32, #tpu.memory_space<vmem>>, vector<40x128xf32>,
    } else {
    }
    return
  }
  func.func @transform_0(%arg0: i32, %arg1: i32, %arg2: i32) -> (i32, i32) {
    %c0_i32 = arith.constant 0 : i32
    return %arg0, %arg2 : i32, i32
  }
  func.func @transform_1(%arg0: i32, %arg1: i32, %arg2: i32) -> (i32, i32) {
    %c0_i32 = arith.constant 0 : i32
    return %arg2, %arg1 : i32, i32
  }
  func.func @transform_2(%arg0: i32, %arg1: i32, %arg2: i32) -> (i32, i32) {
    %c0_i32 = arith.constant 0 : i32
    return %arg0, %arg1 : i32, i32
  }
}

</mosaic_0001>

<llo_original>
// kernel: tpu_custom_call.1
$region0: #{tpu_custom_call.1}
  #allocation0 [shape = 'u32[]', space=smem, size = 0x4, offset = 0x4, fixed_abs, tag = 'smem constant byte address 0x4 - core index']
  #allocation1 [shape = 'u32[144,128]{1,0:T(1,128)}', space=vmem, size = 0x12000, scoped, tag = 'internal scratch']
  #allocation2 [shape = 'f32[40,128]{1,0:T(8,128)}', space=vmem, size = 0x5000, scoped, tag = 'scratch operand']
  %s0 = inlined_call_operand.hbm [shape: f32[40,128], index: 0, kind: input, shape index: {}]
  %s1 = inlined_call_operand.hbm [shape: f32[128,128], index: 1, kind: input, shape index: {}]
  %s2 = inlined_call_operand.hbm [shape: f32[40,128], index: 2, kind: output, shape index: {}]
  %s3 = sld [smem:[#allocation0]]
  $region34: #{tpu_custom_call.1} parent=0
    _
  %s5 = ssub.s32 1, %s3
  %s6 = scalar_select 0, %s5, %s3
  $region1: #{tpu_custom_call.1} parent=0
    #allocation3 [shape = 'u8[20480]{0}', space=vmem, size = 0x5000, scoped, tag = 'input window, operand 0, single buffered']
    #allocation4 [shape = 's32[1]{0}', space=sflag, size = 0x4, scoped, tag = 'scoped memory for tpu_custom_call.1']
    #allocation5 [shape = 's32[1]{0}', space=sflag, size = 0x4, scoped, tag = 'scoped memory for tpu_custom_call.1']
    #allocation6 [shape = 'u8[65536]{0}', space=vmem, size = 0x10000, scoped, tag = 'input window, operand 1, single buffered']
    #allocation7 [shape = 's32[1]{0}', space=sflag, size = 0x4, scoped, tag = 'scoped memory for tpu_custom_call.1']
    #allocation8 [shape = 'u8[20480]{0}', space=vmem, size = 0x5000, scoped, tag = 'output window, operand 0, single buffered']
    %7 = vsyncpa [#allocation4], 0
    %8 = vsyncpa [#allocation7], 0
    %9 = vsyncpa [#allocation5], 0
    // Predicated region
    $region2: #{tpu_custom_call.1} parent=1 // pred_check
      _
    $region3: #{tpu_custom_call.1} parent=1 // pred_check_branch
      %11 = sbr.rel (0) target = $region5
    $region4: #{tpu_custom_call.1} parent=1 // pred_region
      %s13 = ssub.s32 640, 640
      %14 = vsyncadd [#allocation4], %s13
      %s15 = sshll.u32 [#allocation3], 4
      %s16 = int_to_ptr.vmem [resolvable:$true] %s15
      %21 = dma.hbm_to_vmem [thread:$0]  %s0, 640, %s16, [#allocation4], 128, 128, 8
    $region5: #{tpu_custom_call.1} parent=1 // pred_fallthru
      _
    // Predicated region
    $region6: #{tpu_custom_call.1} parent=1 // pred_check
      _
    $region7: #{tpu_custom_call.1} parent=1 // pred_check_branch
      %23 = sbr.rel (0) target = $region9
    $region8: #{tpu_custom_call.1} parent=1 // pred_region
      %s25 = ssub.s32 2048, 2048
      %26 = vsyncadd [#allocation7], %s25
      %s27 = sshll.u32 [#allocation6], 4
      %s28 = int_to_ptr.vmem [resolvable:$true] %s27
      %33 = dma.hbm_to_vmem [thread:$0]  %s1, 2048, %s28, [#allocation7], 128, 128, 8
    $region9: #{tpu_custom_call.1} parent=1 // pred_fallthru
      _
    // Predicated region
    $region10: #{tpu_custom_call.1} parent=1 // pred_check
      _
    $region11: #{tpu_custom_call.1} parent=1 // pred_check_branch
      %35 = sbr.rel (0) target = $region13
    $region12: #{tpu_custom_call.1} parent=1 // pred_region
      %36 = dma.done [#allocation4], 640
    $region13: #{tpu_custom_call.1} parent=1 // pred_fallthru
      _
    // Predicated region
    $region14: #{tpu_custom_call.1} parent=1 // pred_check
      _
    $region15: #{tpu_custom_call.1} parent=1 // pred_check_branch
      %38 = sbr.rel (0) target = $region17
    $region16: #{tpu_custom_call.1} parent=1 // pred_region
      %39 = dma.done [#allocation7], 2048
    $region17: #{tpu_custom_call.1} parent=1 // pred_fallthru
      _
    %p40 = scmp.eq.s32.totalorder 0, 0
    // Predicated region
    $region18: #{tpu_custom_call.1} parent=1 // pred_check
      %p41 = pneg %p40
    $region19: #{tpu_custom_call.1} parent=1 // pred_check_branch
      %43 = sbr.rel (%p41) target = $region21
    $region20: #{tpu_custom_call.1} parent=1 // pred_region
      %44 = vst [vmem:[#allocation2] sm:$0xff] 0.0
      %45 = vst [vmem:[#allocation2 + $0x8] sm:$0xff] 0.0
      %46 = vst [vmem:[#allocation2 + $0x10] sm:$0xff] 0.0
      %47 = vst [vmem:[#allocation2 + $0x18] sm:$0xff] 0.0
      %48 = vst [vmem:[#allocation2 + $0x20] sm:$0xff] 0.0
    $region21: #{tpu_custom_call.1} parent=1 // pred_fallthru
      _
    %v49 = vld [vmem:[#allocation2] sm:$0xff]
    %v50 = vld [vmem:[#allocation2 + $0x8] sm:$0xff]
    %v51 = vld [vmem:[#allocation2 + $0x10] sm:$0xff]
    %v52 = vld [vmem:[#allocation2 + $0x18] sm:$0xff]
    %v53 = vld [vmem:[#allocation2 + $0x20] sm:$0xff]
    %v54 = vld [vmem:[#allocation3] sm:$0xff]
    %v55 = vld [vmem:[#allocation3 + $0x8] sm:$0xff]
    %v56 = vld [vmem:[#allocation3 + $0x10] sm:$0xff]
    %v57 = vld [vmem:[#allocation3 + $0x18] sm:$0xff]
    %v58 = vld [vmem:[#allocation3 + $0x20] sm:$0xff]
    %v59 = vld [vmem:[#allocation6] sm:$0xff]
    %v60 = vld [vmem:[#allocation6 + $0x8] sm:$0xff]
    %v61 = vld [vmem:[#allocation6 + $0x10] sm:$0xff]
    %v62 = vld [vmem:[#allocation6 + $0x18] sm:$0xff]
    %v63 = vld [vmem:[#allocation6 + $0x20] sm:$0xff]
    %v64 = vld [vmem:[#allocation6 + $0x28] sm:$0xff]
    %v65 = vld [vmem:[#allocation6 + $0x30] sm:$0xff]
    %v66 = vld [vmem:[#allocation6 + $0x38] sm:$0xff]
    %v67 = vld [vmem:[#allocation6 + $0x40] sm:$0xff]
    %v68 = vld [vmem:[#allocation6 + $0x48] sm:$0xff]
    %v69 = vld [vmem:[#allocation6 + $0x50] sm:$0xff]
    %v70 = vld [vmem:[#allocation6 + $0x58] sm:$0xff]
    %v71 = vld [vmem:[#allocation6 + $0x60] sm:$0xff]
    %v72 = vld [vmem:[#allocation6 + $0x68] sm:$0xff]
    %v73 = vld [vmem:[#allocation6 + $0x70] sm:$0xff]
    %v74 = vld [vmem:[#allocation6 + $0x78] sm:$0xff]
    %75 = vmatprep.subr.mxu0 0.0
    %76 = vmatpush1.msra.mxu0 %v74
    %77 = vmatprep.subr.mxu0 0.0
    %78 = vmatpush1.msra.mxu0 %v73
    %79 = vmatprep.subr.mxu0 0.0
    %80 = vmatpush1.msra.mxu0 %v72
    %81 = vmatprep.subr.mxu0 0.0
    %82 = vmatpush1.msra.mxu0 %v71
    %83 = vmatprep.subr.mxu0 0.0
    %84 = vmatpush1.msra.mxu0 %v70
    %85 = vmatprep.subr.mxu0 0.0
    %86 = vmatpush1.msra.mxu0 %v69
    %87 = vmatprep.subr.mxu0 0.0
    %88 = vmatpush1.msra.mxu0 %v68
    %89 = vmatprep.subr.mxu0 0.0
    %90 = vmatpush1.msra.mxu0 %v67
    %91 = vmatprep.subr.mxu0 0.0
    %92 = vmatpush1.msra.mxu0 %v66
    %93 = vmatprep.subr.mxu0 0.0
    %94 = vmatpush1.msra.mxu0 %v65
    %95 = vmatprep.subr.mxu0 0.0
    %96 = vmatpush1.msra.mxu0 %v64
    %97 = vmatprep.subr.mxu0 0.0
    %98 = vmatpush1.msra.mxu0 %v63
    %99 = vmatprep.subr.mxu0 0.0
    %100 = vmatpush1.msra.mxu0 %v62
    %101 = vmatprep.subr.mxu0 0.0
    %102 = vmatpush1.msra.mxu0 %v61
    %103 = vmatprep.subr.mxu0 0.0
    %104 = vmatpush1.msra.mxu0 %v60
    %105 = vmatprep.subr.mxu0 0.0
    %106 = vmatpush1.msra.mxu0 %v59
    %107 = vmatprep.subr.mxu0 0.0
    %108 = vmatpush2.msra.mxu0 0.0
    %109 = vmatprep.subr.mxu0 0.0
    %110 = vmatpush2.msra.mxu0 0.0
    %111 = vmatprep.subr.mxu0 0.0
    %112 = vmatpush2.msra.mxu0 0.0
    %113 = vmatprep.subr.mxu0 0.0
    %114 = vmatpush2.msra.mxu0 0.0
    %115 = vmatprep.subr.mxu0 0.0
    %116 = vmatpush2.msra.mxu0 0.0
    %117 = vmatprep.subr.mxu0 0.0
    %118 = vmatpush2.msra.mxu0 0.0
    %119 = vmatprep.subr.mxu0 0.0
    %120 = vmatpush2.msra.mxu0 0.0
    %121 = vmatprep.subr.mxu0 0.0
    %122 = vmatpush2.msra.mxu0 0.0
    %123 = vmatprep.subr.mxu0 0.0
    %124 = vmatpush2.msra.mxu0 0.0
    %125 = vmatprep.subr.mxu0 0.0
    %126 = vmatpush2.msra.mxu0 0.0
    %127 = vmatprep.subr.mxu0 0.0
    %128 = vmatpush2.msra.mxu0 0.0
    %129 = vmatprep.subr.mxu0 0.0
    %130 = vmatpush2.msra.mxu0 0.0
    %131 = vmatprep.subr.mxu0 0.0
    %132 = vmatpush2.msra.mxu0 0.0
    %133 = vmatprep.subr.mxu0 0.0
    %134 = vmatpush2.msra.mxu0 0.0
    %135 = vmatprep.subr.mxu0 0.0
    %136 = vmatpush2.msra.mxu0 0.0
    %137 = vmatprep.subr.mxu0 0.0
    %138 = vmatpush2.msra.mxu0 0.0
    %139 = vmatprep.mubr.f32.mxu0 0.0
    %140 = vmatmul.mubr.f32.gmra.mxu0 %v54
    %v141 = vpop.f32.mrf.mxu0
    %v142 = vadd.f32 0.0, %v141
    %v143 = vpop.f32.mrf.mxu0
    %144 = vmatprep.mubr.f32.mxu0 0.0
    %145 = vmatmul.mubr.f32.gmra.mxu0 %v55
    %v146 = vpop.f32.mrf.mxu0
    %v147 = vadd.f32 0.0, %v146
    %v148 = vpop.f32.mrf.mxu0
    %149 = vmatprep.mubr.f32.mxu0 0.0
    %150 = vmatmul.mubr.f32.gmra.mxu0 %v56
    %v151 = vpop.f32.mrf.mxu0
    %v152 = vadd.f32 0.0, %v151
    %v153 = vpop.f32.mrf.mxu0
    %154 = vmatprep.mubr.f32.mxu0 0.0
    %155 = vmatmul.mubr.f32.gmra.mxu0 %v57
    %v156 = vpop.f32.mrf.mxu0
    %v157 = vadd.f32 0.0, %v156
    %v158 = vpop.f32.mrf.mxu0
    %159 = vmatprep.mubr.f32.mxu0 0.0
    %160 = vmatmul.mubr.f32.gmra.mxu0 %v58
    %v161 = vpop.f32.mrf.mxu0
    %v162 = vadd.f32 0.0, %v161
    %v163 = vpop.f32.mrf.mxu0
    %164 = vdwg.mxu0
    %v165 = vadd.f32 %v49, %v142
    %v166 = vadd.f32 %v50, %v147
    %v167 = vadd.f32 %v51, %v152
    %v168 = vadd.f32 %v52, %v157
    %v169 = vadd.f32 %v53, %v162
    %170 = vst [vmem:[#allocation2] sm:$0xff] %v165
    %171 = vst [vmem:[#allocation2 + $0x8] sm:$0xff] %v166
    %172 = vst [vmem:[#allocation2 + $0x10] sm:$0xff] %v167
    %173 = vst [vmem:[#allocation2 + $0x18] sm:$0xff] %v168
    %174 = vst [vmem:[#allocation2 + $0x20] sm:$0xff] %v169
    // Predicated region
    $region22: #{tpu_custom_call.1} parent=1 // pred_check
      %p175 = pneg %p40
    $region23: #{tpu_custom_call.1} parent=1 // pred_check_branch
      %177 = sbr.rel (%p175) target = $region25
    $region24: #{tpu_custom_call.1} parent=1 // pred_region
      %v178 = vld [vmem:[#allocation2] sm:$0xff]
      %v179 = vld [vmem:[#allocation2 + $0x8] sm:$0xff]
      %v180 = vld [vmem:[#allocation2 + $0x10] sm:$0xff]
      %v181 = vld [vmem:[#allocation2 + $0x18] sm:$0xff]
      %v182 = vld [vmem:[#allocation2 + $0x20] sm:$0xff]
      %183 = vst [vmem:[#allocation8] sm:$0xff] %v178
      %184 = vst [vmem:[#allocation8 + $0x8] sm:$0xff] %v179
      %185 = vst [vmem:[#allocation8 + $0x10] sm:$0xff] %v180
      %186 = vst [vmem:[#allocation8 + $0x18] sm:$0xff] %v181
      %187 = vst [vmem:[#allocation8 + $0x20] sm:$0xff] %v182
    $region25: #{tpu_custom_call.1} parent=1 // pred_fallthru
      _
    // Predicated region
    $region26: #{tpu_custom_call.1} parent=1 // pred_check
      _
    $region27: #{tpu_custom_call.1} parent=1 // pred_check_branch
      %189 = sbr.rel (0) target = $region29
    $region28: #{tpu_custom_call.1} parent=1 // pred_region
      %s191 = ssub.s32 640, 640
      %192 = vsyncadd [#allocation5], %s191
      %s193 = sshll.u32 [#allocation8], 4
      %s194 = int_to_ptr.vmem [resolvable:$true] %s193
      %199 = dma.vmem_to_hbm [thread:$0]  %s194, 640, %s2, [#allocation5], 128, 128, 8
    $region29: #{tpu_custom_call.1} parent=1 // pred_fallthru
      _
    // Predicated region
    $region30: #{tpu_custom_call.1} parent=1 // pred_check
      _
    $region31: #{tpu_custom_call.1} parent=1 // pred_check_branch
      %201 = sbr.rel (0) target = $region33
    $region32: #{tpu_custom_call.1} parent=1 // pred_region
      %202 = dma.done [#allocation5], 640
    $region33: #{tpu_custom_call.1} parent=1 // pred_fallthru
      _
    %203 = vsyncpa [#allocation4], 1
    %204 = vsyncpa [#allocation7], 1
    %205 = vsyncpa [#allocation5], 1

</llo_original>
